<compile_context>
chip_gen: v7x
topology: tpu7x:2x2x1
jax: 0.10.0
libtpu: 0.0.40
codegen_flags: <defaults>
</compile_context>

<pallas_src>
import functools
import math

import jax
import jax.numpy as jnp
from jax.experimental import pallas as pl
from jax.experimental.pallas import tpu as pltpu

EPS = 1e-6
NEG_INF = -1e9


# ------------------------------ small helpers --------------------------------

def _round_up(x, m):
    return (x + m - 1) // m * m


def _row_tiling(M, cap=512):
    """Row tile tm (multiple of 8, <= cap, >=2 tiles when possible) and padded Mp."""
    if M <= 8:
        return 8, 8
    n = max(2, pl.cdiv(M, cap))              # >=2 grid steps -> megacore / pipelining
    tm = min(cap, _round_up(pl.cdiv(M, n), 8))
    return tm, _round_up(M, tm)


def _q_tiling(Lq, cap=128):
    """Query tile tq (multiple of 8, <= cap) and padded Lp."""
    nt = pl.cdiv(Lq, cap)
    tq = _round_up(pl.cdiv(Lq, nt), 8)
    return tq, _round_up(Lq, tq)


def _dff_tiling(Dff, cap=1024):
    """Dff reduction tile (multiple of 128 dividing Dff) so FFN weights are never fully resident."""
    if Dff <= cap:
        return Dff
    for td in range(cap - cap % 128, 127, -128):
        if Dff % td == 0:
            return td
    return Dff  # TODO(synk): pad Dff for awkward sizes instead of falling back to resident weights.


def _pad_rows(x, Mp):
    if x.shape[0] == Mp:
        return x
    return jnp.pad(x, ((0, Mp - x.shape[0]),) + ((0, 0),) * (x.ndim - 1))


def _vmem_estimate(entries):
    total = 0
    for shape, dtype, bufs in entries:
        total += math.prod(shape) * jnp.dtype(dtype).itemsize * bufs
    return int(total * 1.5) + (4 << 20)


def _cparams(dims, vmem_bytes):
    # explicit scoped-VMEM limit sized for the chosen tiles; clamp to [32, 64] MiB so the
    # plan is legal on every generation (v7x physical VMEM is 64 MiB per TensorCore).
    limit = min(max(int(vmem_bytes), 32 << 20), 64 << 20)
    return pltpu.CompilerParams(dimension_semantics=dims, vmem_limit_bytes=limit)


@functools.lru_cache(maxsize=None)
def _single_buffering_supported():
    """One-time probe: can constant-index blocks be single-buffered via pl.Buffered(1)?"""
    try:
        def probe(x_ref, o_ref):
            o_ref[...] = x_ref[...] * 2.0

        out = pl.pallas_call(
            probe,
            grid=(2,),
            in_specs=[pl.BlockSpec((8, 128), lambda i: (0, 0),
                                   pipeline_mode=pl.Buffered(1))],
            out_specs=pl.BlockSpec((8, 128), lambda i: (i, 0)),
            out_shape=jax.ShapeDtypeStruct((16, 128), jnp.float32),
        )(jnp.ones((8, 128), jnp.float32))
        jax.block_until_ready(out)
        return True
    except Exception:
        return False


def _const_spec(shape):
    """Block == full array, same block every grid step (weights/biases stay VMEM resident);
    single-buffered when supported so resident weights are not pointlessly double-buffered."""
    n = len(shape)
    imap = lambda *_: (0,) * n
    if _single_buffering_supported():
        return pl.BlockSpec(shape, imap, pipeline_mode=pl.Buffered(1))
    return pl.BlockSpec(shape, imap)


# ------------------------------ kernel bodies --------------------------------

def _layernorm_f32(x, g, b):
    mean = jnp.mean(x, axis=-1, keepdims=True)
    var = jnp.mean(jnp.square(x - mean), axis=-1, keepdims=True)
    return (x - mean) * jax.lax.rsqrt(var + EPS) * g + b


def _ln_qkv_kernel(x_ref, g_ref, b_ref, w_ref, bias_ref, q_ref, k_ref, v_ref, *,
                   compute_dtype):
    # fused LayerNorm -> concatenated [Q|K|V] projection (one MXU pass over W_qkv)
    D = x_ref.shape[-1]
    x = x_ref[...].astype(jnp.float32)
    y = _layernorm_f32(x, g_ref[...], b_ref[...])
    acc = jnp.dot(y.astype(compute_dtype), w_ref[...].astype(compute_dtype),
                  preferred_element_type=jnp.float32) + bias_ref[...]
    q_ref[...] = acc[:, :D].astype(q_ref.dtype)
    k_ref[...] = acc[:, D:2 * D].astype(k_ref.dtype)
    v_ref[...] = acc[:, 2 * D:].astype(v_ref.dtype)


def _kv_proj_kernel(x_ref, w_ref, bias_ref, k_ref, v_ref, *, compute_dtype):
    # [K|V] projection of the (un-normalized) encoder output
    D = x_ref.shape[-1]
    acc = jnp.dot(x_ref[...].astype(compute_dtype), w_ref[...].astype(compute_dtype),
                  preferred_element_type=jnp.float32) + bias_ref[...]
    k_ref[...] = acc[:, :D].astype(k_ref.dtype)
    v_ref[...] = acc[:, D:].astype(v_ref.dtype)


def _outres_ln_q_kernel(ctx_ref, res_ref, wo_ref, bo_ref, g_ref, b_ref, wq_ref, bq_ref,
                        out_ref, q_ref, *, compute_dtype):
    # fused: self-attn output projection + residual add + LayerNorm + cross-attn Q projection
    proj = jnp.dot(ctx_ref[...].astype(compute_dtype), wo_ref[...].astype(compute_dtype),
                   preferred_element_type=jnp.float32) + bo_ref[...]
    out = res_ref[...].astype(jnp.float32) + proj
    out_ref[...] = out.astype(out_ref.dtype)
    y = _layernorm_f32(out, g_ref[...], b_ref[...])
    q = jnp.dot(y.astype(compute_dtype), wq_ref[...].astype(compute_dtype),
                preferred_element_type=jnp.float32) + bq_ref[...]
    q_ref[...] = q.astype(q_ref.dtype)


def _outres_ln_ffn_kernel(ctx_ref, res_ref, wo_ref, bo_ref, g_ref, b_ref,
                          w1_ref, b1_ref, w2_ref, b2_ref, out_ref,
                          out2_scr, y_scr, acc_scr, *, compute_dtype):
    # fused: cross-attn output projection + residual + LayerNorm + FFN + residual,
    # with the FFN hidden (Dff) dimension tiled as a reduction grid axis (axis 1).
    j = pl.program_id(1)

    @pl.when(j == 0)
    def _():
        proj = jnp.dot(ctx_ref[...].astype(compute_dtype), wo_ref[...].astype(compute_dtype),
                       preferred_element_type=jnp.float32) + bo_ref[...]
        out2 = res_ref[...].astype(jnp.float32) + proj
        out2_scr[...] = out2
        y_scr[...] = _layernorm_f32(out2, g_ref[...], b_ref[...])
        acc_scr[...] = jnp.zeros_like(acc_scr)

    h = jnp.dot(y_scr[...].astype(compute_dtype), w1_ref[...].astype(compute_dtype),
                preferred_element_type=jnp.float32) + b1_ref[...]
    h = jnp.maximum(h, 0.0)
    acc_scr[...] += jnp.dot(h.astype(compute_dtype), w2_ref[...].astype(compute_dtype),
                            preferred_element_type=jnp.float32)

    @pl.when(j == pl.num_programs(1) - 1)
    def _():
        out_ref[...] = (out2_scr[...] + acc_scr[...] + b2_ref[...]).astype(out_ref.dtype)


def _attention_kernel(*refs, n_head, scale, mask_mode, return_attn, q_tile,
                      compute_dtype, exact_softmax):
    # grid = (batch, q-tile). Per step: (tq, D) queries vs the full (Lk, D) K/V.
    # All heads' scores are staged into an (H, tq, Lk) f32 scratch, masked-softmaxed in one
    # vectorized pass; per-head context lands in a (tq, D) scratch -> one lane-dense store.
    s_scr, c_scr = refs[-2], refs[-1]
    q_ref, k_ref, v_ref = refs[0], refs[1], refs[2]
    idx = 3
    m_ref = None
    if mask_mode != "causal":
        m_ref = refs[idx]
        idx += 1
    o_ref = refs[idx]
    a_ref = refs[idx + 1] if return_attn else None

    q = q_ref[0]                       # (tq, D)
    k = k_ref[0]                       # (Lk, D)
    v = v_ref[0]                       # (Lk, D)
    tq, D = q.shape
    Lk = k.shape[0]
    dh = D // n_head                   # NOTE: dh < 128 under-utilizes the 256-wide MXU on v6e/v7x.

    for h in range(n_head):            # static loop (n_head is compile-time)
        sl = slice(h * dh, (h + 1) * dh)
        s_scr[h] = jax.lax.dot_general(
            q[:, sl].astype(compute_dtype), k[:, sl].astype(compute_dtype),
            (((1,), (1,)), ((), ())),
            preferred_element_type=jnp.float32) * scale

    scores = s_scr[...]                # (H, tq, Lk) f32
    if mask_mode == "causal":
        row = pl.program_id(1) * q_tile + jax.lax.broadcasted_iota(jnp.int32, (tq, Lk), 0)
        col = jax.lax.broadcasted_iota(jnp.int32, (tq, Lk), 1)
        keep = (col <= row)[None]                    # (1, tq, Lk), built in-kernel (no mask DMA)
    elif mask_mode == "key_valid":
        keep = (m_ref[...] > 0.0)[None]              # (1, 1, Lk) from a (B, Lk) key-valid vector
    else:  # dense (B, 1, Lq, Lk) torch-style mask
        keep = m_ref[0] > 0.0                        # (1, tq, Lk)
    scores = jnp.where(keep, scores, NEG_INF)

    smax = jnp.max(scores, axis=-1, keepdims=True)
    e = jnp.exp(scores - smax)
    denom = jnp.sum(e, axis=-1, keepdims=True)
    if exact_softmax:
        attn = e / denom               # exact for the *returned* attention map
    else:
        attn = e * pl.reciprocal(denom, approx=True)   # EUP path on the discarded self-attn map

    if a_ref is not None:
        a_ref[0] = attn.astype(a_ref.dtype)            # single coalesced (H, tq, Lk) store

    for h in range(n_head):
        sl = slice(h * dh, (h + 1) * dh)
        c_scr[:, sl] = jnp.dot(attn[h].astype(compute_dtype), v[:, sl].astype(compute_dtype),
                               preferred_element_type=jnp.float32)
    o_ref[0] = c_scr[...].astype(o_ref.dtype)          # single lane-dense (tq, D) store


# ------------------------------ wrappers --------------------------------------

def ln_qkv_proj(x, gamma, beta, w_qkv, b_qkv, compute_dtype):
    B, L, D = x.shape
    M, N = B * L, w_qkv.shape[1]                 # N = 3*D
    tm, Mp = _row_tiling(M)
    xr = _pad_rows(x.reshape(M, D), Mp)
    kernel = functools.partial(_ln_qkv_kernel, compute_dtype=compute_dtype)
    est = _vmem_estimate([((tm, D), x.dtype, 2), ((D, N), w_qkv.dtype, 1),
                          ((1, N), jnp.float32, 1), ((tm, D), compute_dtype, 6)])
    q, k, v = pl.pallas_call(
        kernel,
        grid=(Mp // tm,),
        in_specs=[pl.BlockSpec((tm, D), lambda i: (i, 0)),
                  _const_spec((1, D)), _const_spec((1, D)),
                  _const_spec((D, N)), _const_spec((1, N))],
        out_specs=tuple(pl.BlockSpec((tm, D), lambda i: (i, 0)) for _ in range(3)),
        out_shape=tuple(jax.ShapeDtypeStruct((Mp, D), compute_dtype) for _ in range(3)),
        compiler_params=_cparams(("parallel",), est),
    )(xr, gamma.reshape(1, D), beta.reshape(1, D), w_qkv, b_qkv.reshape(1, N))
    return (q[:M].reshape(B, L, D), k[:M].reshape(B, L, D), v[:M].reshape(B, L, D))


def kv_proj(x, w_kv, b_kv, compute_dtype):
    B, L, D = x.shape
    M, N = B * L, w_kv.shape[1]                  # N = 2*D
    tm, Mp = _row_tiling(M)
    xr = _pad_rows(x.reshape(M, D), Mp)
    kernel = functools.partial(_kv_proj_kernel, compute_dtype=compute_dtype)
    est = _vmem_estimate([((tm, D), x.dtype, 2), ((D, N), w_kv.dtype, 1),
                          ((1, N), jnp.float32, 1), ((tm, D), compute_dtype, 4)])
    k, v = pl.pallas_call(
        kernel,
        grid=(Mp // tm,),
        in_specs=[pl.BlockSpec((tm, D), lambda i: (i, 0)),
                  _const_spec((D, N)), _const_spec((1, N))],
        out_specs=(pl.BlockSpec((tm, D), lambda i: (i, 0)),
                   pl.BlockSpec((tm, D), lambda i: (i, 0))),
        out_shape=(jax.ShapeDtypeStruct((Mp, D), compute_dtype),
                   jax.ShapeDtypeStruct((Mp, D), compute_dtype)),
        compiler_params=_cparams(("parallel",), est),
    )(xr, w_kv, b_kv.reshape(1, N))
    return k[:M].reshape(B, L, D), v[:M].reshape(B, L, D)


def self_out_cross_q(ctx, residual, wo, bo, gamma, beta, wq, bq, compute_dtype):
    B, L, D = residual.shape
    M = B * L
    tm, Mp = _row_tiling(M)
    ctx2 = _pad_rows(ctx.reshape(M, D), Mp)
    res2 = _pad_rows(residual.reshape(M, D), Mp)
    kernel = functools.partial(_outres_ln_q_kernel, compute_dtype=compute_dtype)
    est = _vmem_estimate([((tm, D), ctx.dtype, 2), ((tm, D), residual.dtype, 2),
                          ((D, D), wo.dtype, 1), ((D, D), wq.dtype, 1),
                          ((tm, D), residual.dtype, 2), ((tm, D), compute_dtype, 2)])
    out, q = pl.pallas_call(
        kernel,
        grid=(Mp // tm,),
        in_specs=[pl.BlockSpec((tm, D), lambda i: (i, 0)),
                  pl.BlockSpec((tm, D), lambda i: (i, 0)),
                  _const_spec((D, D)), _const_spec((1, D)),
                  _const_spec((1, D)), _const_spec((1, D)),
                  _const_spec((D, D)), _const_spec((1, D))],
        out_specs=(pl.BlockSpec((tm, D), lambda i: (i, 0)),
                   pl.BlockSpec((tm, D), lambda i: (i, 0))),
        out_shape=(jax.ShapeDtypeStruct((Mp, D), residual.dtype),
                   jax.ShapeDtypeStruct((Mp, D), compute_dtype)),
        compiler_params=_cparams(("parallel",), est),
    )(ctx2, res2, wo, bo.reshape(1, D), gamma.reshape(1, D), beta.reshape(1, D),
      wq, bq.reshape(1, D))
    return out[:M].reshape(B, L, D), q[:M].reshape(B, L, D)


def cross_out_ffn(ctx, residual, wo, bo, gamma, beta, w1, b1, w2, b2, compute_dtype):
    B, L, D = residual.shape
    Dff = w1.shape[1]
    M = B * L
    tm, Mp = _row_tiling(M)
    td = _dff_tiling(Dff)
    nj = Dff // td
    ctx2 = _pad_rows(ctx.reshape(M, D), Mp)
    res2 = _pad_rows(residual.reshape(M, D), Mp)
    kernel = functools.partial(_outres_ln_ffn_kernel, compute_dtype=compute_dtype)
    est = _vmem_estimate([((tm, D), ctx.dtype, 2), ((tm, D), residual.dtype, 2),
                          ((D, D), wo.dtype, 1),
                          ((D, td), w1.dtype, 2), ((td, D), w2.dtype, 2),
                          ((tm, D), residual.dtype, 2),
                          ((tm, D), jnp.float32, 3), ((tm, td), jnp.float32, 1)])
    out = pl.pallas_call(
        kernel,
        grid=(Mp // tm, nj),
        in_specs=[pl.BlockSpec((tm, D), lambda i, j: (i, 0)),
                  pl.BlockSpec((tm, D), lambda i, j: (i, 0)),
                  _const_spec((D, D)), _const_spec((1, D)),
                  _const_spec((1, D)), _const_spec((1, D)),
                  pl.BlockSpec((D, td), lambda i, j: (0, j)),
                  pl.BlockSpec((1, td), lambda i, j: (0, j)),
                  pl.BlockSpec((td, D), lambda i, j: (j, 0)),
                  _const_spec((1, D))],
        out_specs=pl.BlockSpec((tm, D), lambda i, j: (i, 0)),
        out_shape=jax.ShapeDtypeStruct((Mp, D), residual.dtype),
        scratch_shapes=[pltpu.VMEM((tm, D), jnp.float32),
                        pltpu.VMEM((tm, D), jnp.float32),
                        pltpu.VMEM((tm, D), jnp.float32)],
        compiler_params=_cparams(("parallel", "arbitrary"), est),
    )(ctx2, res2, wo, bo.reshape(1, D), gamma.reshape(1, D), beta.reshape(1, D),
      w1, b1.reshape(1, Dff), w2, b2.reshape(1, D))
    return out[:M].reshape(B, L, D)


def attention_core(q, k, v, mask, n_head, *, return_attn, compute_dtype,
                   attn_map_dtype=jnp.bfloat16):
    """q/k/v: (B, L, D). mask: None -> causal (built in-kernel), (B, Lk) key-valid vector,
    or a dense torch-style (B, 1, Lq, Lk) mask (1 = attend, 0 = masked)."""
    B, Lq, D = q.shape
    Lk = k.shape[1]
    tq, Lp = _q_tiling(Lq)
    nq = Lp // tq
    if Lp != Lq:
        q = jnp.pad(q, ((0, 0), (0, Lp - Lq), (0, 0)))

    if mask is not None and mask.ndim == 4 and mask.shape[2] == 1:
        mask = mask.reshape(B, Lk)          # (B,1,1,Lk) padding mask -> key-valid vector
    if mask is None:
        mask_mode = "causal"
    elif mask.ndim == 2:
        mask_mode = "key_valid"
    else:
        mask_mode = "dense"
        if Lp != Lq:
            mask = jnp.pad(mask, ((0, 0), (0, 0), (0, Lp - Lq), (0, 0)), constant_values=1.0)

    scale = 1.0 / math.sqrt(D // n_head)
    kernel = functools.partial(_attention_kernel, n_head=n_head, scale=scale,
                               mask_mode=mask_mode, return_attn=return_attn,
                               q_tile=tq, compute_dtype=compute_dtype,
                               exact_softmax=return_attn)

    in_specs = [pl.BlockSpec((1, tq, D), lambda b, i: (b, i, 0)),
                pl.BlockSpec((1, Lk, D), lambda b, i: (b, 0, 0)),
                pl.BlockSpec((1, Lk, D), lambda b, i: (b, 0, 0))]
    args = [q, k, v]
    if mask_mode == "key_valid":
        in_specs.append(pl.BlockSpec((1, Lk), lambda b, i: (b, 0)))
        args.append(mask.astype(jnp.float32))
    elif mask_mode == "dense":
        in_specs.append(pl.BlockSpec((1, 1, tq, Lk), lambda b, i: (b, 0, i, 0)))
        args.append(mask.astype(jnp.float32))

    scratch = [pltpu.VMEM((n_head, tq, Lk), jnp.float32),   # staged per-head scores
               pltpu.VMEM((tq, D), jnp.float32)]             # per-tile context
    est = _vmem_estimate([((tq, D), q.dtype, 2), ((Lk, D), k.dtype, 4),
                          ((tq, D), q.dtype, 2),
                          ((n_head, tq, Lk), jnp.float32, 1), ((tq, D), jnp.float32, 1),
                          ((n_head, tq, Lk), attn_map_dtype, 2 if return_attn else 0)])
    cparams = _cparams(("parallel", "parallel"), est)
    ctx_spec = pl.BlockSpec((1, tq, D), lambda b, i: (b, i, 0))
    ctx_shape = jax.ShapeDtypeStruct((B, Lp, D), q.dtype)

    if return_attn:
        ctx, attn = pl.pallas_call(
            kernel, grid=(B, nq), in_specs=in_specs,
            out_specs=(ctx_spec,
                       pl.BlockSpec((1, n_head, tq, Lk), lambda b, i: (b, 0, i, 0))),
            out_shape=(ctx_shape,
                       jax.ShapeDtypeStruct((B, n_head, Lp, Lk), attn_map_dtype)),
            scratch_shapes=scratch, compiler_params=cparams,
        )(*args)
        if Lp != Lq:
            ctx, attn = ctx[:, :Lq], attn[:, :, :Lq]
        return ctx, attn

    ctx = pl.pallas_call(
        kernel, grid=(B, nq), in_specs=in_specs,
        out_specs=ctx_spec, out_shape=ctx_shape,
        scratch_shapes=scratch, compiler_params=cparams,
    )(*args)
    if Lp != Lq:
        ctx = ctx[:, :Lq]
    return ctx


# ------------------------------ decoder layer --------------------------------

def decoder_layer(target, encoder_output, target_mask, dec_enc_mask, params, n_head,
                  compute_dtype=jnp.bfloat16, attn_map_dtype=jnp.bfloat16):
    g, b = params["ln_gamma"], params["ln_beta"]      # single shared LayerNorm
    sa, ea, ff = params["self_attn"], params["enc_attn"], params["ffn"]

    # --- self-attention sub-layer (attn map discarded -> never materialized) ---
    q, k, v = ln_qkv_proj(target, g, b, sa["w_qkv"], sa["b_qkv"], compute_dtype)
    ctx = attention_core(q, k, v, target_mask, n_head, return_attn=False,
                         compute_dtype=compute_dtype)
    # fused: self-attn out-proj + residual + LN + cross-attn Q projection
    output, q = self_out_cross_q(ctx, target, sa["w_o"], sa["b_o"], g, b,
                                 ea["w_q"], ea["b_q"], compute_dtype)

    # --- encoder (cross) attention sub-layer ---
    k, v = kv_proj(encoder_output, ea["w_kv"], ea["b_kv"], compute_dtype)
    ctx, attn_map = attention_core(q, k, v, dec_enc_mask, n_head, return_attn=True,
                                   compute_dtype=compute_dtype,
                                   attn_map_dtype=attn_map_dtype)
    # fused: cross-attn out-proj + residual + LN + FFN + residual (Dff-tiled reduction)
    output = cross_out_ffn(ctx, output, ea["w_o"], ea["b_o"], g, b,
                           ff["w1"], ff["b1"], ff["w2"], ff["b2"], compute_dtype)
    return output, attn_map


# ------------------------------ param init ----------------------------------

def init_params(key, hidden_dim, ffn_dim, param_dtype=jnp.bfloat16):
    # Weights are stored pre-transposed in (in, out) layout and in bf16 (MXU operand dtype);
    # biases and LayerNorm parameters stay f32.
    ks = jax.random.split(key, 12)
    s = 0.02

    def lin(k, in_d, out_d):
        return (s * jax.random.normal(k, (in_d, out_d), jnp.float32)).astype(param_dtype)

    def mha_self(ka, kb, kc, kd):
        w_qkv = jnp.concatenate([lin(ka, hidden_dim, hidden_dim),
                                 lin(kb, hidden_dim, hidden_dim),
                                 lin(kc, hidden_dim, hidden_dim)], axis=1)
        return {"w_qkv": w_qkv,
                "b_qkv": jnp.zeros((3 * hidden_dim,), jnp.float32),
                "w_o": lin(kd, hidden_dim, hidden_dim),
                "b_o": jnp.zeros((hidden_dim,), jnp.float32)}

    def mha_cross(ka, kb, kc, kd):
        w_kv = jnp.concatenate([lin(kb, hidden_dim, hidden_dim),
                                lin(kc, hidden_dim, hidden_dim)], axis=1)
        return {"w_q": lin(ka, hidden_dim, hidden_dim),
                "b_q": jnp.zeros((hidden_dim,), jnp.float32),
                "w_kv": w_kv,
                "b_kv": jnp.zeros((2 * hidden_dim,), jnp.float32),
                "w_o": lin(kd, hidden_dim, hidden_dim),
                "b_o": jnp.zeros((hidden_dim,), jnp.float32)}

    return {
        "ln_gamma": jnp.ones((hidden_dim,), jnp.float32),
        "ln_beta": jnp.zeros((hidden_dim,), jnp.float32),
        "self_attn": mha_self(*ks[0:4]),
        "enc_attn": mha_cross(*ks[4:8]),
        "ffn": {"w1": lin(ks[8], hidden_dim, ffn_dim),
                "b1": jnp.zeros((ffn_dim,), jnp.float32),
                "w2": lin(ks[9], ffn_dim, hidden_dim),
                "b2": jnp.zeros((hidden_dim,), jnp.float32)},
    }


# --------------------------------- main --------------------------------------

if __name__ == "__main__":
    B, L_TGT, L_SRC = 2, 8, 8
    HIDDEN, N_HEAD, FFN = 32, 4, 64

    key = jax.random.PRNGKey(0)
    k_tgt, k_enc = jax.random.split(key)
    target = jax.random.normal(k_tgt, (B, L_TGT, HIDDEN), jnp.float32)
    encoder_output = jax.random.normal(k_enc, (B, L_SRC, HIDDEN), jnp.float32)

    # self-attention mask: causal -> pass None, the mask is generated in-kernel (no dense DMA)
    target_mask = None
    # decoder-encoder mask: (B, L_SRC) key-validity vector (1 = attend, 0 = padded source token),
    # broadcast inside the kernel instead of DMA'ing a dense (B, 1, Lq, Lk) mask.
    dec_enc_mask = jnp.stack([jnp.ones((L_SRC,), jnp.float32),
                              jnp.concatenate([jnp.ones((L_SRC - 2,), jnp.float32),
                                               jnp.zeros((2,), jnp.float32)])])

    params = init_params(jax.random.PRNGKey(42), HIDDEN, FFN)

    out, attn_map = decoder_layer(target, encoder_output, target_mask, dec_enc_mask,
                                  params, N_HEAD)
    jax.block_until_ready((out, attn_map))

    assert out.shape == (B, L_TGT, HIDDEN)
    assert attn_map.shape == (B, N_HEAD, L_TGT, L_SRC)
    assert bool(jnp.isfinite(out.astype(jnp.float32)).all())
    print("KERNEL_OK")
</pallas_src>

<mosaic_0001>
module attributes {stable_mosaic.version = 11 : i64} {
  func.func @probe(%arg0: i32, %arg1: memref<8x128xf32, #tpu.memory_space<vmem>>, %arg2: memref<8x128xf32, #tpu.memory_space<vmem>>) attributes {dimension_semantics = [#tpu.dimension_semantics<arbitrary>], iteration_bounds = array<i64: 2>, scalar_prefetch = 0 : i64, scratch_operands = 0 : i64, tpu.core_type = #tpu.core_type<tc>, window_params = [{pipeline_mode = #tpu.pipeline_mode<synchronous>, transform_indices = @transform_0, window_bounds = array<i64: 8, 128>}, {transform_indices = @transform_1, window_bounds = array<i64: 8, 128>}]} {
    %c0 = arith.constant 0 : index
    %c0_0 = arith.constant 0 : index
    %0 = vector.load %arg1[%c0, %c0_0] : memref<8x128xf32, #tpu.memory_space<vmem>>, vector<8x128xf32>
    %cst = arith.constant 2.000000e+00 : f32
    %1 = vector.broadcast %cst : f32 to vector<8x128xf32>
    %2 = arith.mulf %0, %1 : vector<8x128xf32>
    %c0_1 = arith.constant 0 : index
    %c0_2 = arith.constant 0 : index
    %3 = vector.load %arg2[%c0_1, %c0_2] : memref<8x128xf32, #tpu.memory_space<vmem>>, vector<8x128xf32>
    tpu.vector_store %arg2[%c0_1, %c0_2], %2 {strides = array<i32>} : memref<8x128xf32, #tpu.memory_space<vmem>>, vector<8x128xf32>,
    return
  }
  func.func @transform_0(%arg0: i32) -> (i32, i32) {
    %c0_i32 = arith.constant 0 : i32
    %c0_i32_0 = arith.constant 0 : i32
    %c0_i32_1 = arith.constant 0 : i32
    return %c0_i32, %c0_i32_0 : i32, i32
  }
  func.func @transform_1(%arg0: i32) -> (i32, i32) {
    %c0_i32 = arith.constant 0 : i32
    %c0_i32_0 = arith.constant 0 : i32
    return %arg0, %c0_i32 : i32, i32
  }
}

module attributes {stable_mosaic.version = 11 : i64} {
  func.func @_ln_qkv_kernel(%arg0: i32, %arg1: memref<8x32xf32, #tpu.memory_space<vmem>>, %arg2: memref<1x32xf32, #tpu.memory_space<vmem>>, %arg3: memref<1x32xf32, #tpu.memory_space<vmem>>, %arg4: memref<32x96xbf16, #tpu.memory_space<vmem>>, %arg5: memref<1x96xf32, #tpu.memory_space<vmem>>, %arg6: memref<8x32xbf16, #tpu.memory_space<vmem>>, %arg7: memref<8x32xbf16, #tpu.memory_space<vmem>>, %arg8: memref<8x32xbf16, #tpu.memory_space<vmem>>) attributes {dimension_semantics = [#tpu.dimension_semantics<parallel>], iteration_bounds = array<i64: 2>, scalar_prefetch = 0 : i64, scratch_operands = 0 : i64, tpu.core_type = #tpu.core_type<tc>, window_params = [{transform_indices = @transform_0, window_bounds = array<i64: 8, 32>}, {pipeline_mode = #tpu.pipeline_mode<synchronous>, transform_indices = @transform_1, window_bounds = array<i64: 1, 32>}, {pipeline_mode = #tpu.pipeline_mode<synchronous>, transform_indices = @transform_2, window_bounds = array<i64: 1, 32>}, {pipeline_mode = #tpu.pipeline_mode<synchronous>, transform_indices = @transform_3, window_bounds = array<i64: 32, 96>}, {pipeline_mode = #tpu.pipeline_mode<synchronous>, transform_indices = @transform_4, window_bounds = array<i64: 1, 96>}, {transform_indices = @transform_5, window_bounds = array<i64: 8, 32>}, {transform_indices = @transform_6, window_bounds = array<i64: 8, 32>}, {transform_indices = @transform_7, window_bounds = array<i64: 8, 32>}]} {
    %c0 = arith.constant 0 : index
    %c0_0 = arith.constant 0 : index
    %0 = vector.load %arg1[%c0, %c0_0] : memref<8x32xf32, #tpu.memory_space<vmem>>, vector<8x32xf32>
    %c0_1 = arith.constant 0 : index
    %c0_2 = arith.constant 0 : index
    %1 = vector.load %arg2[%c0_1, %c0_2] : memref<1x32xf32, #tpu.memory_space<vmem>>, vector<1x32xf32>
    %c0_3 = arith.constant 0 : index
    %c0_4 = arith.constant 0 : index
    %2 = vector.load %arg3[%c0_3, %c0_4] : memref<1x32xf32, #tpu.memory_space<vmem>>, vector<1x32xf32>
    %cst = arith.constant dense<0.000000e+00> : vector<8xf32>
    %3 = vector.multi_reduction <add>, %0, %cst [1] : vector<8x32xf32> to vector<8xf32>
    %4 = vector.shape_cast %3 : vector<8xf32> to vector<8x1xf32>
    %cst_5 = arith.constant 3.200000e+01 : f32
    %5 = vector.broadcast %cst_5 : f32 to vector<8x1xf32>
    %6 = arith.divf %4, %5 : vector<8x1xf32>
    %7 = vector.broadcast %6 : vector<8x1xf32> to vector<8x32xf32>
    %8 = arith.subf %0, %7 : vector<8x32xf32>
    %9 = arith.mulf %8, %8 : vector<8x32xf32>
    %cst_6 = arith.constant dense<0.000000e+00> : vector<8xf32>
    %10 = vector.multi_reduction <add>, %9, %cst_6 [1] : vector<8x32xf32> to vector<8xf32>
    %11 = vector.shape_cast %10 : vector<8xf32> to vector<8x1xf32>
    %cst_7 = arith.constant 3.200000e+01 : f32
    %12 = vector.broadcast %cst_7 : f32 to vector<8x1xf32>
    %13 = arith.divf %11, %12 : vector<8x1xf32>
    %14 = vector.broadcast %6 : vector<8x1xf32> to vector<8x32xf32>
    %15 = arith.subf %0, %14 : vector<8x32xf32>
    %cst_8 = arith.constant 9.99999997E-7 : f32
    %16 = vector.broadcast %cst_8 : f32 to vector<8x1xf32>
    %17 = arith.addf %13, %16 : vector<8x1xf32>
    %18 = math.rsqrt %17 : vector<8x1xf32>
    %19 = vector.broadcast %18 : vector<8x1xf32> to vector<8x32xf32>
    %20 = arith.mulf %15, %19 : vector<8x32xf32>
    %21 = vector.broadcast %1 : vector<1x32xf32> to vector<8x32xf32>
    %22 = arith.mulf %20, %21 : vector<8x32xf32>
    %23 = vector.broadcast %2 : vector<1x32xf32> to vector<8x32xf32>
    %24 = arith.addf %22, %23 : vector<8x32xf32>
    %25 = arith.truncf %24 : vector<8x32xf32> to vector<8x32xbf16>
    %c0_9 = arith.constant 0 : index
    %c0_10 = arith.constant 0 : index
    %26 = vector.load %arg4[%c0_9, %c0_10] : memref<32x96xbf16, #tpu.memory_space<vmem>>, vector<32x96xbf16>
    %cst_11 = arith.constant dense<0.000000e+00> : vector<8x96xf32>
    %27 = tpu.matmul %25, %26, %cst_11 {dimension_numbers = #tpu.dot_dimension_numbers<[1], [0], [0], [1], [0, 0, 1, 1], [], []>} : vector<8x32xbf16>, vector<32x96xbf16>, vector<8x96xf32> -> vector<8x96xf32>
    %c0_12 = arith.constant 0 : index
    %c0_13 = arith.constant 0 : index
    %28 = vector.load %arg5[%c0_12, %c0_13] : memref<1x96xf32, #tpu.memory_space<vmem>>, vector<1x96xf32>
    %29 = vector.broadcast %28 : vector<1x96xf32> to vector<8x96xf32>
    %30 = arith.addf %27, %29 : vector<8x96xf32>
    %31 = vector.extract_strided_slice %30 {offsets = [0, 0], sizes = [8, 32], strides = [1, 1]} : vector<8x96xf32> to vector<8x32xf32>
    %32 = arith.truncf %31 : vector<8x32xf32> to vector<8x32xbf16>
    %c0_14 = arith.constant 0 : index
    %c0_15 = arith.constant 0 : index
    %33 = vector.load %arg6[%c0_14, %c0_15] : memref<8x32xbf16, #tpu.memory_space<vmem>>, vector<8x32xbf16>
    tpu.vector_store %arg6[%c0_14, %c0_15], %32 {strides = array<i32>} : memref<8x32xbf16, #tpu.memory_space<vmem>>, vector<8x32xbf16>,
    %34 = vector.extract_strided_slice %30 {offsets = [0, 32], sizes = [8, 32], strides = [1, 1]} : vector<8x96xf32> to vector<8x32xf32>
    %35 = arith.truncf %34 : vector<8x32xf32> to vector<8x32xbf16>
    %c0_16 = arith.constant 0 : index
    %c0_17 = arith.constant 0 : index
    %36 = vector.load %arg7[%c0_16, %c0_17] : memref<8x32xbf16, #tpu.memory_space<vmem>>, vector<8x32xbf16>
    tpu.vector_store %arg7[%c0_16, %c0_17], %35 {strides = array<i32>} : memref<8x32xbf16, #tpu.memory_space<vmem>>, vector<8x32xbf16>,
    %37 = vector.extract_strided_slice %30 {offsets = [0, 64], sizes = [8, 32], strides = [1, 1]} : vector<8x96xf32> to vector<8x32xf32>
    %38 = arith.truncf %37 : vector<8x32xf32> to vector<8x32xbf16>
    %c0_18 = arith.constant 0 : index
    %c0_19 = arith.constant 0 : index
    %39 = vector.load %arg8[%c0_18, %c0_19] : memref<8x32xbf16, #tpu.memory_space<vmem>>, vector<8x32xbf16>
    tpu.vector_store %arg8[%c0_18, %c0_19], %38 {strides = array<i32>} : memref<8x32xbf16, #tpu.memory_space<vmem>>, vector<8x32xbf16>,
    return
  }
  func.func @transform_0(%arg0: i32) -> (i32, i32) {
    %c0_i32 = arith.constant 0 : i32
    %c0_i32_0 = arith.constant 0 : i32
    return %arg0, %c0_i32 : i32, i32
  }
  func.func @transform_1(%arg0: i32) -> (i32, i32) {
    %c0_i32 = arith.constant 0 : i32
    %c0_i32_0 = arith.constant 0 : i32
    %c0_i32_1 = arith.constant 0 : i32
    return %c0_i32, %c0_i32_0 : i32, i32
  }
  func.func @transform_2(%arg0: i32) -> (i32, i32) {
    %c0_i32 = arith.constant 0 : i32
    %c0_i32_0 = arith.constant 0 : i32
    %c0_i32_1 = arith.constant 0 : i32
    return %c0_i32, %c0_i32_0 : i32, i32
  }
  func.func @transform_3(%arg0: i32) -> (i32, i32) {
    %c0_i32 = arith.constant 0 : i32
    %c0_i32_0 = arith.constant 0 : i32
    %c0_i32_1 = arith.constant 0 : i32
    return %c0_i32, %c0_i32_0 : i32, i32
  }
  func.func @transform_4(%arg0: i32) -> (i32, i32) {
    %c0_i32 = arith.constant 0 : i32
    %c0_i32_0 = arith.constant 0 : i32
    %c0_i32_1 = arith.constant 0 : i32
    return %c0_i32, %c0_i32_0 : i32, i32
  }
  func.func @transform_5(%arg0: i32) -> (i32, i32) {
    %c0_i32 = arith.constant 0 : i32
    %c0_i32_0 = arith.constant 0 : i32
    return %arg0, %c0_i32 : i32, i32
  }
  func.func @transform_6(%arg0: i32) -> (i32, i32) {
    %c0_i32 = arith.constant 0 : i32
    %c0_i32_0 = arith.constant 0 : i32
    return %arg0, %c0_i32 : i32, i32
  }
  func.func @transform_7(%arg0: i32) -> (i32, i32) {
    %c0_i32 = arith.constant 0 : i32
    %c0_i32_0 = arith.constant 0 : i32
    return %arg0, %c0_i32 : i32, i32
  }
}

</mosaic_0001>

<llo_original>
// kernel: tpu_custom_call.1
$region0: #{tpu_custom_call.1}
  #allocation0 [shape = 'u32[]', space=smem, size = 0x4, offset = 0x4, fixed_abs, tag = 'smem constant byte address 0x4 - core index']
  #allocation1 [shape = 'u32[144,128]{1,0:T(1,128)}', space=vmem, size = 0x12000, scoped, tag = 'internal scratch']
  %s0 = inlined_call_operand.hbm [shape: f32[8,128], index: 0, kind: input, shape index: {}]
  %s1 = inlined_call_operand.hbm [shape: f32[16,128], index: 1, kind: output, shape index: {}]
  %s2 = sld [smem:[#allocation0]]
  $region41: #{tpu_custom_call.1} parent=0
    _
  %s4 = ssub.s32 1, %s2
  %s5 = scalar_select 0, %s4, %s2
  $region1: #{tpu_custom_call.1} parent=0
    #allocation2 [shape = 'u8[4096]{0}', space=vmem, size = 0x1000, scoped, tag = 'input window, operand 0, single buffered']
    #allocation3 [shape = 's32[2]{0}', space=sflag, size = 0x8, scoped, tag = 'scoped memory for tpu_custom_call.1']
    #allocation4 [shape = 's32[2]{0}', space=sflag, size = 0x8, scoped, tag = 'scoped memory for tpu_custom_call.1']
    #allocation5 [shape = 'u8[8192]{0}', space=vmem, size = 0x2000, scoped, tag = 'output window, operand 0']
    %6 = vsyncpa [#allocation3], 0
    %7 = vsyncpa [#allocation4], 0
    %s8 = scalar_lea.sflag [#allocation4], 1
    %9 = vsyncpa %s8, 0
    loop: start=0, step=1, limit=4
    $region2: #{tpu_custom_call.1} parent=1 // loop_pre_header
      _
    $region3: #{tpu_custom_call.1} parent=1 // loop_header
      %s11 = sphi 0, %s15
      %p12 = scmp.ge.s32.totalorder %s11, 4
      %s19 = sphi 0, %s19
      %s21 = sphi 0, %s19
      %s22 = sphi 0, %s21
      %s36 = sphi 0, %s22
      %s42 = sphi 0, %s44
      %s45 = sphi 0, %s42
      %s46 = sphi 0, %s45
      %s62 = sphi 0, %s46
    $region4: #{tpu_custom_call.1} parent=1 // loop_header_branch
      %14 = sbr.rel (%p12) target = $region8
    $region5: #{tpu_custom_call.1} parent=1 // loop_body
      %s16 = ssub.s32 %s11, 1
      %s17 = ssub.s32 %s11, 2
      %s18 = sadd.s32 %s11, 1
      %s20 = sadd.s32 %s19, 1
      %p23 = scmp.eq.s32.totalorder %s11, 1
      %p24 = scmp.ne.s32.totalorder %s19, %s21
      %p25 = scmp.eq.s32.totalorder %s11, 0
      %p26 = por %p24, %p25
      %p27 = scmp.ne.s32.totalorder %s19, %s21
      %p28 = scmp.eq.s32.totalorder %s16, 1
      %p29 = por %p27, %p28
      %p30 = scmp.ne.s32.totalorder %s21, %s22
      %p31 = scmp.eq.s32.totalorder %s16, 0
      %p32 = por %p30, %p31
      %p33 = scmp.ne.s32.totalorder %s21, %s22
      %p34 = scmp.eq.s32.totalorder %s17, 1
      %p35 = por %p33, %p34
      %p37 = scmp.ne.s32.totalorder %s22, %s36
      %p38 = scmp.eq.s32.totalorder %s17, 0
      %p39 = por %p37, %p38
      %s40 = ssub.s32 %s11, %s18
      %p41 = scmp.eq.s32.totalorder %s40, 0
      %s43 = sadd.s32 %s42, 1
      %s44 = scalar_select %p41, %s42, %s43
      %p47 = pneg %p41
      %p48 = scmp.eq.s32.totalorder %s11, 1
      %p49 = por %p47, %p48
      %p50 = scmp.ne.s32.totalorder %s42, %s45
      %p51 = scmp.eq.s32.totalorder %s11, 0
      %p52 = por %p50, %p51
      %p53 = scmp.ne.s32.totalorder %s42, %s45
      %p54 = scmp.eq.s32.totalorder %s16, 1
      %p55 = por %p53, %p54
      %p56 = scmp.ne.s32.totalorder %s45, %s46
      %p57 = scmp.eq.s32.totalorder %s16, 0
      %p58 = por %p56, %p57
      %p59 = scmp.ne.s32.totalorder %s45, %s46
      %p60 = scmp.eq.s32.totalorder %s17, 1
      %p61 = por %p59, %p60
      %p63 = scmp.ne.s32.totalorder %s46, %s62
      %p64 = scmp.eq.s32.totalorder %s17, 0
      %p65 = por %p63, %p64
      %p66 = scmp.le.s32.totalorder 1, %s11
      %p67 = scmp.lt.s32.totalorder %s11, 3
      %p68 = pnand %p66, %p67
      %p69 = pneg %p68
      // Predicated region
      $region9: #{tpu_custom_call.1} parent=5 // pred_check
        _
      $region10: #{tpu_custom_call.1} parent=5 // pred_check_branch
        %71 = sbr.rel (%p68) target = $region12
      $region11: #{tpu_custom_call.1} parent=5 // pred_region
        %s72 = ssub.s32 %s11, 1
        // Predicated region
        $region13: #{tpu_custom_call.1} parent=11 // pred_check
          %p73 = pneg %p32
        $region14: #{tpu_custom_call.1} parent=11 // pred_check_branch
          %75 = sbr.rel (%p73) target = $region16
        $region15: #{tpu_custom_call.1} parent=11 // pred_region
          %s77 = ssub.s32 128, 128
          %78 = vsyncadd [#allocation3], %s77
          %s80 = sshll.u32 [#allocation2], 4
          %s81 = int_to_ptr.vmem [resolvable:$true] %s80
          %83 = dma.hbm_to_vmem [thread:$0]  %s0, 128, %s81, [#allocation3]
        $region16: #{tpu_custom_call.1} parent=11 // pred_fallthru
          _
      $region12: #{tpu_custom_call.1} parent=5 // pred_fallthru
        _
      %p84 = scmp.lt.s32.totalorder %s11, 2
      // Predicated region
      $region17: #{tpu_custom_call.1} parent=5 // pred_check
        %p85 = pneg %p84
      $region18: #{tpu_custom_call.1} parent=5 // pred_check_branch
        %87 = sbr.rel (%p85) target = $region20
      $region19: #{tpu_custom_call.1} parent=5 // pred_region
        _
      $region20: #{tpu_custom_call.1} parent=5 // pred_fallthru
        _
      %p88 = scmp.le.s32.totalorder 1, %s11
      %p89 = scmp.lt.s32.totalorder %s11, 3
      %p90 = pnand %p88, %p89
      %p91 = pneg %p90
      // Predicated region
      $region21: #{tpu_custom_call.1} parent=5 // pred_check
        _
      $region22: #{tpu_custom_call.1} parent=5 // pred_check_branch
        %93 = sbr.rel (%p90) target = $region24
      $region23: #{tpu_custom_call.1} parent=5 // pred_region
        %s94 = ssub.s32 %s11, 1
        // Predicated region
        $region25: #{tpu_custom_call.1} parent=23 // pred_check
          %p95 = pneg %p32
        $region26: #{tpu_custom_call.1} parent=23 // pred_check_branch
          %97 = sbr.rel (%p95) target = $region28
        $region27: #{tpu_custom_call.1} parent=23 // pred_region
          %98 = dma.done [#allocation3], 128
        $region28: #{tpu_custom_call.1} parent=23 // pred_fallthru
          _
        %p99 = pneg %p32
        %p100 = pneg %p29
        %p101 = pneg %p58
        %p102 = pneg %p55
        %s103 = sand.u32 %s45, 1
        %s104 = scalar_lea.sflag [#allocation4], %s103
        %s105 = sand.u32 %s45, 1
        %s106 = smul.addr %s105, 8
        %s107 = scalar_lea.vmem [#allocation5], %s106
        %v108 = vld [vmem:[#allocation2] sm:$0xff]
        %v109 = vmul.f32 %v108, 2.0
        %110 = vst [vmem:[%s107] sm:$0xff] %v109
        %s111 = sand.u32 %s45, 1
        %s112 = scalar_lea.sflag [#allocation4], %s111
        %s113 = sand.u32 %s45, 1
        %s114 = smul.addr %s113, 8
        %s115 = scalar_lea.vmem [#allocation5], %s114
        // Predicated region
        $region29: #{tpu_custom_call.1} parent=23 // pred_check
          %p116 = pneg %p55
        $region30: #{tpu_custom_call.1} parent=23 // pred_check_branch
          %118 = sbr.rel (%p116) target = $region32
        $region31: #{tpu_custom_call.1} parent=23 // pred_region
          %s120 = ssub.s32 128, 128
          %121 = vsyncadd %s112, %s120
          %s122 = smul.addr %s16, 128
          %s123 = scalar_lea.hbm %s1, %s122
          %s125 = sshll.u32 %s115, 4
          %s126 = int_to_ptr.vmem [resolvable:$true] %s125
          %128 = dma.vmem_to_hbm [thread:$0]  %s126, 128, %s123, %s112
        $region32: #{tpu_custom_call.1} parent=23 // pred_fallthru
          _
      $region24: #{tpu_custom_call.1} parent=5 // pred_fallthru
        _
      %p129 = scmp.le.s32.totalorder 2, %s11
      // Predicated region
      $region33: #{tpu_custom_call.1} parent=5 // pred_check
        %p130 = pneg %p129
      $region34: #{tpu_custom_call.1} parent=5 // pred_check_branch
        %132 = sbr.rel (%p130) target = $region36
      $region35: #{tpu_custom_call.1} parent=5 // pred_region
        %s133 = ssub.s32 %s11, 2
        // Predicated region
        $region37: #{tpu_custom_call.1} parent=35 // pred_check
          %p134 = pneg %p61
        $region38: #{tpu_custom_call.1} parent=35 // pred_check_branch
          %136 = sbr.rel (%p134) target = $region40
        $region39: #{tpu_custom_call.1} parent=35 // pred_region
          %s137 = sand.u32 %s46, 1
          %s138 = scalar_lea.sflag [#allocation4], %s137
          %s139 = sand.u32 %s46, 1
          %s140 = smul.addr %s139, 8
          %s141 = scalar_lea.vmem [#allocation5], %s140
          %142 = dma.done %s138, 128
        $region40: #{tpu_custom_call.1} parent=35 // pred_fallthru
          _
      $region36: #{tpu_custom_call.1} parent=5 // pred_fallthru
        _
    $region6: #{tpu_custom_call.1} parent=1 // loop_footer
      %s15 = sadd.s32 1, %s11
    $region7: #{tpu_custom_call.1} parent=1 // loop_footer_branch
      %10 = sbr.rel target = $region3
    $region8: #{tpu_custom_call.1} parent=1 // loop_exit
      _
    %143 = vsyncpa [#allocation3], 1
    %s144 = scalar_lea.sflag [#allocation3], 1
    %145 = vsyncpa %s144, 1
    %146 = vsyncpa [#allocation4], 1
    %s147 = scalar_lea.sflag [#allocation4], 1
    %148 = vsyncpa %s147, 1

// kernel: tpu_custom_call.1
$region0: #{tpu_custom_call.1}
  #allocation0 [shape = 'u32[]', space=smem, size = 0x4, offset = 0x4, fixed_abs, tag = 'smem constant byte address 0x4 - core index']
  #allocation1 [shape = 'u32[144,128]{1,0:T(1,128)}', space=vmem, size = 0x12000, scoped, tag = 'internal scratch']
  %s0 = inlined_call_operand.hbm [shape: f32[16,32], index: 0, kind: input, shape index: {}]
  %s1 = inlined_call_operand.vmem [shape: f32[1,32], index: 1, kind: input, shape index: {}]
  %s2 = inlined_call_operand.vmem [shape: f32[1,32], index: 2, kind: input, shape index: {}]
  %s3 = inlined_call_operand.hbm [shape: bf16[32,96], index: 3, kind: input, shape index: {}]
  %s4 = inlined_call_operand.vmem [shape: f32[1,96], index: 4, kind: input, shape index: {}]
  %s5 = inlined_call_operand.hbm [shape: bf16[16,32], index: 5, kind: output, shape index: {0}]
  %s6 = inlined_call_operand.hbm [shape: bf16[16,32], index: 6, kind: output, shape index: {1}]
  %s7 = inlined_call_operand.hbm [shape: bf16[16,32], index: 7, kind: output, shape index: {2}]
  %8 = xla_tuple %s5, %s6, %s7
  %s9 = sld [smem:[#allocation0]]
  $region77: #{tpu_custom_call.1} parent=0
    _
  %s11 = ssub.s32 1, %s9
  %s12 = scalar_select 0, %s11, %s9
  $region1: #{tpu_custom_call.1} parent=0
    #allocation2 [shape = 'u8[8192]{0}', space=vmem, size = 0x2000, scoped, tag = 'input window, operand 0']
    #allocation3 [shape = 's32[2]{0}', space=sflag, size = 0x8, scoped, tag = 'scoped memory for tpu_custom_call.1']
    #allocation4 [shape = 's32[2]{0}', space=sflag, size = 0x8, scoped, tag = 'scoped memory for tpu_custom_call.1']
    #allocation5 [shape = 'u8[8192]{0}', space=vmem, size = 0x2000, scoped, tag = 'input window, operand 3, single buffered']
    #allocation6 [shape = 's32[1]{0}', space=sflag, size = 0x4, scoped, tag = 'scoped memory for tpu_custom_call.1']
    #allocation7 [shape = 'u8[4096]{0}', space=vmem, size = 0x1000, scoped, tag = 'output window, operand 0']
    #allocation8 [shape = 'u8[4096]{0}', space=vmem, size = 0x1000, scoped, tag = 'output window, operand 1']
    #allocation9 [shape = 's32[2]{0}', space=sflag, size = 0x8, scoped, tag = 'scoped memory for tpu_custom_call.1']
    #allocation10 [shape = 'u8[4096]{0}', space=vmem, size = 0x1000, scoped, tag = 'output window, operand 2']
    %13 = vsyncpa [#allocation3], 0
    %s14 = scalar_lea.sflag [#allocation3], 1
    %15 = vsyncpa %s14, 0
    %16 = vsyncpa [#allocation6], 0
    %17 = vsyncpa [#allocation4], 0
    %s18 = scalar_lea.sflag [#allocation4], 1
    %19 = vsyncpa %s18, 0
    %20 = vsyncpa [#allocation9], 0
    %s21 = scalar_lea.sflag [#allocation9], 1
    %22 = vsyncpa %s21, 0
    loop: start=0, step=1, limit=4
    $region2: #{tpu_custom_call.1} parent=1 // loop_pre_header
      _
    $region3: #{tpu_custom_call.1} parent=1 // loop_header
      %s24 = sphi 0, %s28
      %p25 = scmp.ge.s32.totalorder %s24, 4
      %s34 = sphi 0, %s36
      %s37 = sphi 0, %s34
      %s38 = sphi 0, %s37
      %s54 = sphi 0, %s38
      %s58 = sphi 0, %s58
      %s60 = sphi 0, %s58
      %s61 = sphi 0, %s60
      %s75 = sphi 0, %s61
      %s79 = sphi 0, %s79
      %s81 = sphi 0, %s79
      %s82 = sphi 0, %s81
      %s96 = sphi 0, %s82
      %s100 = sphi 0, %s100
      %s102 = sphi 0, %s100
      %s103 = sphi 0, %s102
      %s117 = sphi 0, %s103
      %s121 = sphi 0, %s121
      %s123 = sphi 0, %s121
      %s124 = sphi 0, %s123
      %s138 = sphi 0, %s124
      %s144 = sphi 0, %s146
      %s147 = sphi 0, %s144
      %s148 = sphi 0, %s147
      %s164 = sphi 0, %s148
      %s170 = sphi 0, %s172
      %s173 = sphi 0, %s170
      %s174 = sphi 0, %s173
      %s190 = sphi 0, %s174
      %s196 = sphi 0, %s198
      %s199 = sphi 0, %s196
      %s200 = sphi 0, %s199
      %s216 = sphi 0, %s200
    $region4: #{tpu_custom_call.1} parent=1 // loop_header_branch
      %27 = sbr.rel (%p25) target = $region8
    $region5: #{tpu_custom_call.1} parent=1 // loop_body
      %s29 = ssub.s32 %s24, 1
      %s30 = ssub.s32 %s24, 2
      %s31 = sadd.s32 %s24, 1
      %s32 = ssub.s32 %s24, %s31
      %p33 = scmp.eq.s32.totalorder %s32, 0
      %s35 = sadd.s32 %s34, 1
      %s36 = scalar_select %p33, %s34, %s35
      %p39 = pneg %p33
      %p40 = scmp.eq.s32.totalorder %s24, 1
      %p41 = por %p39, %p40
      %p42 = scmp.ne.s32.totalorder %s34, %s37
      %p43 = scmp.eq.s32.totalorder %s24, 0
      %p44 = por %p42, %p43
      %p45 = scmp.ne.s32.totalorder %s34, %s37
      %p46 = scmp.eq.s32.totalorder %s29, 1
      %p47 = por %p45, %p46
      %p48 = scmp.ne.s32.totalorder %s37, %s38
      %p49 = scmp.eq.s32.totalorder %s29, 0
      %p50 = por %p48, %p49
      %p51 = scmp.ne.s32.totalorder %s37, %s38
      %p52 = scmp.eq.s32.totalorder %s30, 1
      %p53 = por %p51, %p52
      %p55 = scmp.ne.s32.totalorder %s38, %s54
      %p56 = scmp.eq.s32.totalorder %s30, 0
      %p57 = por %p55, %p56
      %s59 = sadd.s32 %s58, 1
      %p62 = scmp.eq.s32.totalorder %s24, 1
      %p63 = scmp.ne.s32.totalorder %s58, %s60
      %p64 = scmp.eq.s32.totalorder %s24, 0
      %p65 = por %p63, %p64
      %p66 = scmp.ne.s32.totalorder %s58, %s60
      %p67 = scmp.eq.s32.totalorder %s29, 1
      %p68 = por %p66, %p67
      %p69 = scmp.ne.s32.totalorder %s60, %s61
      %p70 = scmp.eq.s32.totalorder %s29, 0
      %p71 = por %p69, %p70
      %p72 = scmp.ne.s32.totalorder %s60, %s61
      %p73 = scmp.eq.s32.totalorder %s30, 1
      %p74 = por %p72, %p73
      %p76 = scmp.ne.s32.totalorder %s61, %s75
      %p77 = scmp.eq.s32.totalorder %s30, 0
      %p78 = por %p76, %p77
      %s80 = sadd.s32 %s79, 1
      %p83 = scmp.eq.s32.totalorder %s24, 1
      %p84 = scmp.ne.s32.totalorder %s79, %s81
      %p85 = scmp.eq.s32.totalorder %s24, 0
      %p86 = por %p84, %p85
      %p87 = scmp.ne.s32.totalorder %s79, %s81
      %p88 = scmp.eq.s32.totalorder %s29, 1
      %p89 = por %p87, %p88
      %p90 = scmp.ne.s32.totalorder %s81, %s82
      %p91 = scmp.eq.s32.totalorder %s29, 0
      %p92 = por %p90, %p91
      %p93 = scmp.ne.s32.totalorder %s81, %s82
      %p94 = scmp.eq.s32.totalorder %s30, 1
      %p95 = por %p93, %p94
      %p97 = scmp.ne.s32.totalorder %s82, %s96
      %p98 = scmp.eq.s32.totalorder %s30, 0
      %p99 = por %p97, %p98
      %s101 = sadd.s32 %s100, 1
      %p104 = scmp.eq.s32.totalorder %s24, 1
      %p105 = scmp.ne.s32.totalorder %s100, %s102
      %p106 = scmp.eq.s32.totalorder %s24, 0
      %p107 = por %p105, %p106
      %p108 = scmp.ne.s32.totalorder %s100, %s102
      %p109 = scmp.eq.s32.totalorder %s29, 1
      %p110 = por %p108, %p109
      %p111 = scmp.ne.s32.totalorder %s102, %s103
      %p112 = scmp.eq.s32.totalorder %s29, 0
      %p113 = por %p111, %p112
      %p114 = scmp.ne.s32.totalorder %s102, %s103
      %p115 = scmp.eq.s32.totalorder %s30, 1
      %p116 = por %p114, %p115
      %p118 = scmp.ne.s32.totalorder %s103, %s117
      %p119 = scmp.eq.s32.totalorder %s30, 0
      %p120 = por %p118, %p119
      %s122 = sadd.s32 %s121, 1
      %p125 = scmp.eq.s32.totalorder %s24, 1
      %p126 = scmp.ne.s32.totalorder %s121, %s123
      %p127 = scmp.eq.s32.totalorder %s24, 0
      %p128 = por %p126, %p127
      %p129 = scmp.ne.s32.totalorder %s121, %s123
      %p130 = scmp.eq.s32.totalorder %s29, 1
      %p131 = por %p129, %p130
      %p132 = scmp.ne.s32.totalorder %s123, %s124
      %p133 = scmp.eq.s32.totalorder %s29, 0
      %p134 = por %p132, %p133
      %p135 = scmp.ne.s32.totalorder %s123, %s124
      %p136 = scmp.eq.s32.totalorder %s30, 1
      %p137 = por %p135, %p136
      %p139 = scmp.ne.s32.totalorder %s124, %s138
      %p140 = scmp.eq.s32.totalorder %s30, 0
      %p141 = por %p139, %p140
      %s142 = ssub.s32 %s24, %s31
      %p143 = scmp.eq.s32.totalorder %s142, 0
      %s145 = sadd.s32 %s144, 1
      %s146 = scalar_select %p143, %s144, %s145
      %p149 = pneg %p143
      %p150 = scmp.eq.s32.totalorder %s24, 1
      %p151 = por %p149, %p150
      %p152 = scmp.ne.s32.totalorder %s144, %s147
      %p153 = scmp.eq.s32.totalorder %s24, 0
      %p154 = por %p152, %p153
      %p155 = scmp.ne.s32.totalorder %s144, %s147
      %p156 = scmp.eq.s32.totalorder %s29, 1
      %p157 = por %p155, %p156
      %p158 = scmp.ne.s32.totalorder %s147, %s148
      %p159 = scmp.eq.s32.totalorder %s29, 0
      %p160 = por %p158, %p159
      %p161 = scmp.ne.s32.totalorder %s147, %s148
      %p162 = scmp.eq.s32.totalorder %s30, 1
      %p163 = por %p161, %p162
      %p165 = scmp.ne.s32.totalorder %s148, %s164
      %p166 = scmp.eq.s32.totalorder %s30, 0
      %p167 = por %p165, %p166
      %s168 = ssub.s32 %s24, %s31
      %p169 = scmp.eq.s32.totalorder %s168, 0
      %s171 = sadd.s32 %s170, 1
      %s172 = scalar_select %p169, %s170, %s171
      %p175 = pneg %p169
      %p176 = scmp.eq.s32.totalorder %s24, 1
      %p177 = por %p175, %p176
      %p178 = scmp.ne.s32.totalorder %s170, %s173
      %p179 = scmp.eq.s32.totalorder %s24, 0
      %p180 = por %p178, %p179
      %p181 = scmp.ne.s32.totalorder %s170, %s173
      %p182 = scmp.eq.s32.totalorder %s29, 1
      %p183 = por %p181, %p182
      %p184 = scmp.ne.s32.totalorder %s173, %s174
      %p185 = scmp.eq.s32.totalorder %s29, 0
      %p186 = por %p184, %p185
      %p187 = scmp.ne.s32.totalorder %s173, %s174
      %p188 = scmp.eq.s32.totalorder %s30, 1
      %p189 = por %p187, %p188
      %p191 = scmp.ne.s32.totalorder %s174, %s190
      %p192 = scmp.eq.s32.totalorder %s30, 0
      %p193 = por %p191, %p192
      %s194 = ssub.s32 %s24, %s31
      %p195 = scmp.eq.s32.totalorder %s194, 0
      %s197 = sadd.s32 %s196, 1
      %s198 = scalar_select %p195, %s196, %s197
      %p201 = pneg %p195
      %p202 = scmp.eq.s32.totalorder %s24, 1
      %p203 = por %p201, %p202
      %p204 = scmp.ne.s32.totalorder %s196, %s199
      %p205 = scmp.eq.s32.totalorder %s24, 0
      %p206 = por %p204, %p205
      %p207 = scmp.ne.s32.totalorder %s196, %s199
      %p208 = scmp.eq.s32.totalorder %s29, 1
      %p209 = por %p207, %p208
      %p210 = scmp.ne.s32.totalorder %s199, %s200
      %p211 = scmp.eq.s32.totalorder %s29, 0
      %p212 = por %p210, %p211
      %p213 = scmp.ne.s32.totalorder %s199, %s200
      %p214 = scmp.eq.s32.totalorder %s30, 1
      %p215 = por %p213, %p214
      %p217 = scmp.ne.s32.totalorder %s200, %s216
      %p218 = scmp.eq.s32.totalorder %s30, 0
      %p219 = por %p217, %p218
      %p220 = scmp.le.s32.totalorder 1, %s24
      %p221 = scmp.lt.s32.totalorder %s24, 3
      %p222 = pnand %p220, %p221
      %p223 = pneg %p222
      // Predicated region
      $region9: #{tpu_custom_call.1} parent=5 // pred_check
        _
      $region10: #{tpu_custom_call.1} parent=5 // pred_check_branch
        %225 = sbr.rel (%p222) target = $region12
      $region11: #{tpu_custom_call.1} parent=5 // pred_region
        %s226 = ssub.s32 %s24, 1
        // Predicated region
        $region13: #{tpu_custom_call.1} parent=11 // pred_check
          %p227 = pneg %p71
        $region14: #{tpu_custom_call.1} parent=11 // pred_check_branch
          %229 = sbr.rel (%p227) target = $region16
        $region15: #{tpu_custom_call.1} parent=11 // pred_region
          _
        $region16: #{tpu_custom_call.1} parent=11 // pred_fallthru
          _
        // Predicated region
        $region17: #{tpu_custom_call.1} parent=11 // pred_check
          %p230 = pneg %p92
        $region18: #{tpu_custom_call.1} parent=11 // pred_check_branch
          %232 = sbr.rel (%p230) target = $region20
        $region19: #{tpu_custom_call.1} parent=11 // pred_region
          _
        $region20: #{tpu_custom_call.1} parent=11 // pred_fallthru
          _
        // Predicated region
        $region21: #{tpu_custom_call.1} parent=11 // pred_check
          %p233 = pneg %p113
        $region22: #{tpu_custom_call.1} parent=11 // pred_check_branch
          %235 = sbr.rel (%p233) target = $region24
        $region23: #{tpu_custom_call.1} parent=11 // pred_region
          %s237 = ssub.s32 256, 256
          %238 = vsyncadd [#allocation6], %s237
          %s239 = sshll.u32 [#allocation5], 4
          %s240 = int_to_ptr.vmem [resolvable:$true] %s239
          %245 = dma.hbm_to_vmem [thread:$0]  %s3, 256, %s240, [#allocation6], 64, 64, 4
        $region24: #{tpu_custom_call.1} parent=11 // pred_fallthru
          _
        // Predicated region
        $region25: #{tpu_custom_call.1} parent=11 // pred_check
          %p246 = pneg %p134
        $region26: #{tpu_custom_call.1} parent=11 // pred_check_branch
          %248 = sbr.rel (%p246) target = $region28
        $region27: #{tpu_custom_call.1} parent=11 // pred_region
          _
        $region28: #{tpu_custom_call.1} parent=11 // pred_fallthru
          _
      $region12: #{tpu_custom_call.1} parent=5 // pred_fallthru
        _
      %p249 = scmp.lt.s32.totalorder %s24, 2
      // Predicated region
      $region29: #{tpu_custom_call.1} parent=5 // pred_check
        %p250 = pneg %p249
      $region30: #{tpu_custom_call.1} parent=5 // pred_check_branch
        %252 = sbr.rel (%p250) target = $region32
      $region31: #{tpu_custom_call.1} parent=5 // pred_region
        // Predicated region
        $region33: #{tpu_custom_call.1} parent=31 // pred_check
          %p253 = pneg %p44
        $region34: #{tpu_custom_call.1} parent=31 // pred_check_branch
          %255 = sbr.rel (%p253) target = $region36
        $region35: #{tpu_custom_call.1} parent=31 // pred_region
          %s256 = sand.u32 %s34, 1
          %s257 = scalar_lea.sflag [#allocation3], %s256
          %s258 = sand.u32 %s34, 1
          %s259 = smul.addr %s258, 8
          %s260 = scalar_lea.vmem [#allocation2], %s259
          %s262 = ssub.s32 128, 128
          %263 = vsyncadd %s257, %s262
          %s264 = smul.addr %s24, 128
          %s265 = scalar_lea.hbm %s0, %s264
          %s267 = sshll.u32 %s260, 4
          %s268 = int_to_ptr.vmem [resolvable:$true] %s267
          %270 = dma.hbm_to_vmem [thread:$0]  %s265, 128, %s268, %s257
        $region36: #{tpu_custom_call.1} parent=31 // pred_fallthru
          _
      $region32: #{tpu_custom_call.1} parent=5 // pred_fallthru
        _
      %p271 = scmp.le.s32.totalorder 1, %s24
      %p272 = scmp.lt.s32.totalorder %s24, 3
      %p273 = pnand %p271, %p272
      %p274 = pneg %p273
      // Predicated region
      $region37: #{tpu_custom_call.1} parent=5 // pred_check
        _
      $region38: #{tpu_custom_call.1} parent=5 // pred_check_branch
        %276 = sbr.rel (%p273) target = $region40
      $region39: #{tpu_custom_call.1} parent=5 // pred_region
        %s277 = ssub.s32 %s24, 1
        %s278 = sand.u32 %s37, 1
        %s279 = scalar_lea.sflag [#allocation3], %s278
        %s280 = sand.u32 %s37, 1
        %s281 = smul.addr %s280, 8
        %s282 = scalar_lea.vmem [#allocation2], %s281
        // Predicated region
        $region41: #{tpu_custom_call.1} parent=39 // pred_check
          %p283 = pneg %p50
        $region42: #{tpu_custom_call.1} parent=39 // pred_check_branch
          %285 = sbr.rel (%p283) target = $region44
        $region43: #{tpu_custom_call.1} parent=39 // pred_region
          %286 = dma.done %s279, 128
        $region44: #{tpu_custom_call.1} parent=39 // pred_fallthru
          _
        // Predicated region
        $region45: #{tpu_custom_call.1} parent=39 // pred_check
          %p287 = pneg %p113
        $region46: #{tpu_custom_call.1} parent=39 // pred_check_branch
          %289 = sbr.rel (%p287) target = $region48
        $region47: #{tpu_custom_call.1} parent=39 // pred_region
          %290 = dma.done [#allocation6], 256
        $region48: #{tpu_custom_call.1} parent=39 // pred_fallthru
          _
        %s291 = sand.u32 %s37, 1
        %s292 = scalar_lea.sflag [#allocation3], %s291
        %s293 = sand.u32 %s37, 1
        %s294 = smul.addr %s293, 8
        %s295 = scalar_lea.vmem [#allocation2], %s294
        %p296 = pneg %p50
        %p297 = pneg %p47
        %p298 = pneg %p71
        %p299 = pneg %p68
        %p300 = pneg %p92
        %p301 = pneg %p89
        %p302 = pneg %p113
        %p303 = pneg %p110
        %p304 = pneg %p134
        %p305 = pneg %p131
        %p306 = pneg %p160
        %p307 = pneg %p157
        %s308 = sand.u32 %s147, 1
        %s309 = scalar_lea.sflag [#allocation4], %s308
        %s310 = sand.u32 %s147, 1
        %s311 = smul.addr %s310, 4
        %s312 = scalar_lea.vmem [#allocation7], %s311
        %p313 = pneg %p186
        %p314 = pneg %p183
        %s315 = sand.u32 %s29, 1
        %s316 = scalar_lea.sflag [#allocation9], %s315
        %s317 = sand.u32 %s173, 1
        %s318 = smul.addr %s317, 4
        %s319 = scalar_lea.vmem [#allocation8], %s318
        %p320 = pneg %p212
        %p321 = pneg %p209
        %s322 = sand.u32 %s29, 1
        %s323 = scalar_lea.sflag [#allocation9], %s322
        %s324 = sand.u32 %s199, 1
        %s325 = smul.addr %s324, 4
        %s326 = scalar_lea.vmem [#allocation10], %s325
        %v328 = vld [vmem:[%s282] sm:$0xff]
        %v329 = vld [vmem:[%s1] sm:$0x1]
        %v330 = vld [vmem:[%s2] sm:$0x1]
        %vm331 = vcmask 261120
        %v332 = vsel %vm331, %v328, 0.0
        %333 = vadd.xlane.f32.xlu0 %v332
        %v334 = vpop.xlane.xlu0 %333
        %v335 = vrcp.pop 32.0
        %v336 = vmul.f32 %v334, %v335
        %v337 = vsub.f32 %v328, %v336
        %v338 = vmul.f32 %v337, %v337
        %v339 = vsel %vm331, %v338, 0.0
        %340 = vadd.xlane.f32.xlu0 %v339
        %v341 = vpop.xlane.xlu0 %340
        %v342 = vmul.f32 %v341, %v335
        %v343 = vadd.f32 %v342, 1e-06
        %v344 = vrsqrt.pop %v343
        %v345 = vmul.f32 %v337, %v344
        %v347 = vlaneseq
        %v348 = vshrl.u32 %v347, 7
        %v349 = vsub.s32 0, %v348
        %v350 = vrot.slane %v329, %v349
        %v352 = vmul.f32 %v345, %v350
        %v354 = vlaneseq
        %v355 = vshrl.u32 %v354, 7
        %v356 = vsub.s32 0, %v355
        %v357 = vrot.slane %v330, %v356
        %v359 = vadd.f32 %v352, %v357
        %v360 = vpack.c.bf16 %v359, %v359
        %v361 = vld [vmem:[#allocation5] sm:$0xf]
        %v362 = vld [vmem:[#allocation5 + $0x4] sm:$0xf]
        %v363 = vld [vmem:[#allocation5 + $0x8] sm:$0xf]
        %v364 = vld [vmem:[#allocation5 + $0xc] sm:$0xf]
        %v365 = vld [vmem:[%s4] sm:$0x1]
        %v367 = vlaneseq
        %v368 = vshrl.u32 %v367, 7
        %v369 = vsub.s32 0, %v368
        %v370 = vrot.slane %v365, %v369
        %v376 = vunpack.c.l.b16 %v361
        %v377 = vunpack.c.l.b16 %v362
        %v378 = vunpack.c.l.b16 %v363
        %v379 = vunpack.c.l.b16 %v364
        %v380 = vpack.c.b16 %v377, %v376
        %v381 = vpack.c.b16 %v379, %v378
        %v385 = vsel %vm331, %v360, 0
        %387 = vmatprep.subr.bf16.mxu0 0
        %388 = vmatpush1.bf16.msra.mxu0 %v380
        %389 = vmatprep.subr.bf16.mxu0 0
        %390 = vmatpush1.bf16.msra.mxu0 %v381
        %391 = vmatprep.subr.bf16.mxu0 0
        %392 = vmatpush1.bf16.msra.mxu0 0
        %393 = vmatprep.subr.bf16.mxu0 0
        %394 = vmatpush1.bf16.msra.mxu0 0
        %395 = vmatprep.subr.bf16.mxu0 0
        %396 = vmatpush1.bf16.msra.mxu0 0
        %397 = vmatprep.subr.bf16.mxu0 0
        %398 = vmatpush1.bf16.msra.mxu0 0
        %399 = vmatprep.subr.bf16.mxu0 0
        %400 = vmatpush1.bf16.msra.mxu0 0
        %401 = vmatprep.subr.bf16.mxu0 0
        %402 = vmatpush1.bf16.msra.mxu0 0
        %403 = vmatprep.subr.bf16.mxu0 0
        %404 = vmatpush1.bf16.msra.mxu0 0
        %405 = vmatprep.subr.bf16.mxu0 0
        %406 = vmatpush1.bf16.msra.mxu0 0
        %407 = vmatprep.subr.bf16.mxu0 0
        %408 = vmatpush1.bf16.msra.mxu0 0
        %409 = vmatprep.subr.bf16.mxu0 0
        %410 = vmatpush1.bf16.msra.mxu0 0
        %411 = vmatprep.subr.bf16.mxu0 0
        %412 = vmatpush1.bf16.msra.mxu0 0
        %413 = vmatprep.subr.bf16.mxu0 0
        %414 = vmatpush1.bf16.msra.mxu0 0
        %415 = vmatprep.subr.bf16.mxu0 0
        %416 = vmatpush1.bf16.msra.mxu0 0
        %417 = vmatprep.subr.bf16.mxu0 0
        %418 = vmatpush1.bf16.msra.mxu0 0
        %419 = vmatprep.mubr.bf16.mxu0 0
        %420 = vmatmul.mubr.bf16.gmra.mrb[0].mxu0 %v385
        %v421 = vpop.f32.mrb[0].mxu0
        %v422 = vadd.f32 %v370, %v421
        %v423 = vpop.f32.mrb[0].mxu0
        %v424 = vpop.f32.mrb[0].mxu0
        %v425 = vpop.f32.mrb[0].mxu0
        %426 = vdwg.mxu0
        %v427 = vpack.c.bf16 %v422, %v422
        %vm428 = vcmask 257024
        %429 = vst.msk [vmem:[%s312] sm:$0xf] %vm428, %v427
        %v431 = vunpack.c.l.b16 %v427
        %v432 = vpack.c.b16 %v431, %v431
        %433 = vrot.lane.b32.xlu0 %v432, 96
        %v434 = vpop.permute.xlu0 %433
        %436 = vst.msk [vmem:[%s319] sm:$0xf] %vm428, %v434
        %437 = vrot.lane.b32.xlu0 %v432, 64
        %v438 = vpop.permute.xlu0 %437
        %440 = vst.msk [vmem:[%s326] sm:$0xf] %vm428, %v438
        %s441 = sand.u32 %s147, 1
        %s442 = scalar_lea.sflag [#allocation4], %s441
        %s443 = sand.u32 %s147, 1
        %s444 = smul.addr %s443, 4
        %s445 = scalar_lea.vmem [#allocation7], %s444
        %s446 = sand.u32 %s29, 1
        %s447 = scalar_lea.sflag [#allocation9], %s446
        %s448 = sand.u32 %s173, 1
        %s449 = smul.addr %s448, 4
        %s450 = scalar_lea.vmem [#allocation8], %s449
        %s451 = sand.u32 %s29, 1
        %s452 = scalar_lea.sflag [#allocation9], %s451
        %s453 = sand.u32 %s199, 1
        %s454 = smul.addr %s453, 4
        %s455 = scalar_lea.vmem [#allocation10], %s454
        // Predicated region
        $region49: #{tpu_custom_call.1} parent=39 // pred_check
          %p456 = pneg %p157
        $region50: #{tpu_custom_call.1} parent=39 // pred_check_branch
          %458 = sbr.rel (%p456) target = $region52
        $region51: #{tpu_custom_call.1} parent=39 // pred_region
          %s460 = ssub.s32 64, 64
          %461 = vsyncadd %s442, %s460
          %s462 = smul.addr %s29, 64
          %s463 = scalar_lea.hbm %s5, %s462
          %s465 = sshll.u32 %s445, 4
          %s466 = int_to_ptr.vmem [resolvable:$true] %s465
          %468 = dma.vmem_to_hbm [thread:$0]  %s466, 64, %s463, %s442
        $region52: #{tpu_custom_call.1} parent=39 // pred_fallthru
          _
        // Predicated region
        $region53: #{tpu_custom_call.1} parent=39 // pred_check
          %p469 = pneg %p183
        $region54: #{tpu_custom_call.1} parent=39 // pred_check_branch
          %471 = sbr.rel (%p469) target = $region56
        $region55: #{tpu_custom_call.1} parent=39 // pred_region
          %s473 = ssub.s32 64, 64
          %474 = vsyncadd %s447, %s473
          %s475 = smul.addr %s29, 64
          %s476 = scalar_lea.hbm %s6, %s475
          %s478 = sshll.u32 %s450, 4
          %s479 = int_to_ptr.vmem [resolvable:$true] %s478
          %481 = dma.vmem_to_hbm [thread:$0]  %s479, 64, %s476, %s447
        $region56: #{tpu_custom_call.1} parent=39 // pred_fallthru
          _
        // Predicated region
        $region57: #{tpu_custom_call.1} parent=39 // pred_check
          %p482 = pneg %p209
        $region58: #{tpu_custom_call.1} parent=39 // pred_check_branch
          %484 = sbr.rel (%p482) target = $region60
        $region59: #{tpu_custom_call.1} parent=39 // pred_region
          %s486 = ssub.s32 64, 64
          %487 = vsyncadd %s452, %s486
          %s488 = smul.addr %s29, 64
          %s489 = scalar_lea.hbm %s7, %s488
          %s491 = sshll.u32 %s455, 4
          %s492 = int_to_ptr.vmem [resolvable:$true] %s491
          %494 = dma.vmem_to_hbm [thread:$0]  %s492, 64, %s489, %s452
        $region60: #{tpu_custom_call.1} parent=39 // pred_fallthru
          _
      $region40: #{tpu_custom_call.1} parent=5 // pred_fallthru
        _
      %p495 = scmp.le.s32.totalorder 2, %s24
      // Predicated region
      $region61: #{tpu_custom_call.1} parent=5 // pred_check
        %p496 = pneg %p495
      $region62: #{tpu_custom_call.1} parent=5 // pred_check_branch
        %498 = sbr.rel (%p496) target = $region64
      $region63: #{tpu_custom_call.1} parent=5 // pred_region
        %s499 = ssub.s32 %s24, 2
        // Predicated region
        $region65: #{tpu_custom_call.1} parent=63 // pred_check
          %p500 = pneg %p163
        $region66: #{tpu_custom_call.1} parent=63 // pred_check_branch
          %502 = sbr.rel (%p500) target = $region68
        $region67: #{tpu_custom_call.1} parent=63 // pred_region
          %s503 = sand.u32 %s148, 1
          %s504 = scalar_lea.sflag [#allocation4], %s503
          %s505 = sand.u32 %s148, 1
          %s506 = smul.addr %s505, 4
          %s507 = scalar_lea.vmem [#allocation7], %s506
          %508 = dma.done %s504, 64
        $region68: #{tpu_custom_call.1} parent=63 // pred_fallthru
          _
        // Predicated region
        $region69: #{tpu_custom_call.1} parent=63 // pred_check
          %p509 = pneg %p189
        $region70: #{tpu_custom_call.1} parent=63 // pred_check_branch
          %511 = sbr.rel (%p509) target = $region72
        $region71: #{tpu_custom_call.1} parent=63 // pred_region
          %s512 = sand.u32 %s30, 1
          %s513 = scalar_lea.sflag [#allocation9], %s512
          %s514 = sand.u32 %s174, 1
          %s515 = smul.addr %s514, 4
          %s516 = scalar_lea.vmem [#allocation8], %s515
          %517 = dma.done %s513, 64
        $region72: #{tpu_custom_call.1} parent=63 // pred_fallthru
          _
        // Predicated region
        $region73: #{tpu_custom_call.1} parent=63 // pred_check
          %p518 = pneg %p215
        $region74: #{tpu_custom_call.1} parent=63 // pred_check_branch
          %520 = sbr.rel (%p518) target = $region76
        $region75: #{tpu_custom_call.1} parent=63 // pred_region
          %s521 = sand.u32 %s30, 1
          %s522 = scalar_lea.sflag [#allocation9], %s521
          %s523 = sand.u32 %s200, 1
          %s524 = smul.addr %s523, 4
          %s525 = scalar_lea.vmem [#allocation10], %s524
          %526 = dma.done %s522, 64
        $region76: #{tpu_custom_call.1} parent=63 // pred_fallthru
          _
      $region64: #{tpu_custom_call.1} parent=5 // pred_fallthru
        _
    $region6: #{tpu_custom_call.1} parent=1 // loop_footer
      %s28 = sadd.s32 1, %s24
    $region7: #{tpu_custom_call.1} parent=1 // loop_footer_branch
      %23 = sbr.rel target = $region3
    $region8: #{tpu_custom_call.1} parent=1 // loop_exit
      _
    %527 = vsyncpa [#allocation3], 1
    %s528 = scalar_lea.sflag [#allocation3], 1
    %529 = vsyncpa %s528, 1
    %530 = vsyncpa [#allocation6], 1
    %531 = vsyncpa [#allocation4], 1
    %s532 = scalar_lea.sflag [#allocation4], 1
    %533 = vsyncpa %s532, 1
    %534 = vsyncpa [#allocation9], 1
    %s535 = scalar_lea.sflag [#allocation9], 1
    %536 = vsyncpa %s535, 1

</llo_original>
